<compile_context>
chip_gen: v7x
topology: tpu7x:2x2x1
jax: 0.10.0
libtpu: 0.0.40
codegen_flags: <defaults>
</compile_context>

<pallas_src>
import functools

import jax
import jax.numpy as jnp
from jax.experimental import pallas as pl
from jax.experimental.pallas import tpu as pltpu

SUBLANE = 8  # TPU sublane width (second-to-last dim of a vreg)


def _round_up(x: int, m: int) -> int:
    return (x + m - 1) // m * m


def mlp_kernel(x_ref, w1_ref, b1_ref, w2_ref, b2_ref, o_ref):
    # hidden = relu(x @ W1 + b1): cast x to bf16 in-kernel, f32 accumulation.
    x = x_ref[...].astype(w1_ref.dtype)
    h = jnp.dot(x, w1_ref[...], preferred_element_type=jnp.float32)
    h = jnp.maximum(h + b1_ref[...], 0.0)                 # f32 epilogue
    # out = hidden @ W2 + b2
    o = jnp.dot(h.astype(w2_ref.dtype), w2_ref[...],
                preferred_element_type=jnp.float32)
    o_ref[...] = (o + b2_ref[...]).astype(o_ref.dtype)


@functools.partial(jax.jit, static_argnames=("tile_b",))
def net_forward(x, w1, b1, w2, b2, *, tile_b: int = 1024):
    """Pallas implementation of Net.forward.

    x : (B, n_feature) float32
    w1: (n_feature, n_hidden)   b1: (1, n_hidden)
    w2: (n_hidden, n_output)    b2: (1, n_output)
    returns (B, n_output) float32
    """
    B, F = x.shape
    H = w1.shape[1]
    O = w2.shape[1]

    # Pad the batch only to the 8-row sublane multiple (cheap, exact).
    B8 = _round_up(B, SUBLANE)
    if B8 != B:
        x = jnp.pad(x, ((0, B8 - B), (0, 0)))

    # Batch tile: multiple of 8 sublanes, no larger than the (padded) batch.
    tile_b = _round_up(min(tile_b, B8), SUBLANE)
    # v7x has 2 TensorCores; once the batch is non-trivial make sure the
    # "parallel" batch axis has at least 2 grid steps so both get work.
    if B8 >= 128 and pl.cdiv(B8, tile_b) < 2:
        tile_b = _round_up(pl.cdiv(B8, 2), SUBLANE)
    num_steps = pl.cdiv(B8, tile_b)

    compute_dtype = jnp.bfloat16
    w1c = w1.astype(compute_dtype)
    w2c = w2.astype(compute_dtype)
    b1c = b1.reshape(1, H).astype(jnp.float32)
    b2c = b2.reshape(1, O).astype(jnp.float32)

    # Resident (constant index_map) blocks are never re-fetched; once the
    # weights are big enough, drop their double-buffer to save VMEM (v7x).
    resident_bytes = (F * H + H * O) * 2  # bf16
    if resident_bytes > 2 * 1024 * 1024:
        resident_kwargs = dict(pipeline_mode=pl.Buffered(1))
    else:
        resident_kwargs = {}

    # Footprint-based VMEM limit (leave headroom on v7x's 64 MiB per core).
    vmem_need = (
        2 * tile_b * F * 4        # x blocks, double-buffered f32
        + resident_bytes          # resident bf16 weights
        + (H + O) * 4             # biases, f32
        + 2 * tile_b * O * 4      # output blocks, double-buffered f32
        + tile_b * H * 4          # hidden intermediate, f32
    )
    vmem_limit = int(min(max(4 * vmem_need, 8 * 1024 * 1024),
                         48 * 1024 * 1024))

    out = pl.pallas_call(
        mlp_kernel,
        out_shape=jax.ShapeDtypeStruct((B8, O), jnp.float32),
        grid=(num_steps,),
        in_specs=[
            # Activations: tiled along batch only (f32 in HBM, cast in-kernel).
            pl.BlockSpec((tile_b, F), lambda i: (i, 0)),
            # Weights / biases: full-array blocks, resident across grid steps.
            pl.BlockSpec((F, H), lambda i: (0, 0), **resident_kwargs),
            pl.BlockSpec((1, H), lambda i: (0, 0), **resident_kwargs),
            pl.BlockSpec((H, O), lambda i: (0, 0), **resident_kwargs),
            pl.BlockSpec((1, O), lambda i: (0, 0), **resident_kwargs),
        ],
        # Output at its natural width O: avoids O_pad/O x extra HBM writeback.
        out_specs=pl.BlockSpec((tile_b, O), lambda i: (i, 0)),
        compiler_params=pltpu.CompilerParams(
            dimension_semantics=("parallel",),   # v7x: 2 TCs split the batch
            vmem_limit_bytes=vmem_limit,
        ),
    )(x, w1c, b1c, w2c, b2c)

    return out[:B] if B8 != B else out


def init_linear_params(key, fan_in, fan_out):
    """Deterministic init mimicking torch.nn.Linear (uniform +/- 1/sqrt(fan_in)).

    Weight is stored pre-transposed as [fan_in, fan_out]; bias as [1, fan_out],
    so the kernel computes y = x @ W + b (== PyTorch's x @ weight.T + bias).
    """
    kw, kb = jax.random.split(key)
    bound = 1.0 / jnp.sqrt(jnp.float32(fan_in))
    w = jax.random.uniform(kw, (fan_in, fan_out), jnp.float32, -bound, bound)
    b = jax.random.uniform(kb, (1, fan_out), jnp.float32, -bound, bound)
    return w, b


if __name__ == "__main__":
    # Net(n_feature=8, n_hidden=32, n_output=4), batch = 16
    n_feature, n_hidden, n_output = 8, 32, 4
    batch = 16

    root = jax.random.PRNGKey(0)
    kx, k1, k2 = jax.random.split(root, 3)

    x = jax.random.normal(kx, (batch, n_feature), jnp.float32)
    w1, b1 = init_linear_params(k1, n_feature, n_hidden)
    w2, b2 = init_linear_params(k2, n_hidden, n_output)

    out = net_forward(x, w1, b1, w2, b2)
    out = jax.block_until_ready(out)
    assert out.shape == (batch, n_output)

    # Pure-JAX reference with the same bf16-input / f32-accumulate recipe.
    bf16 = jnp.bfloat16
    h_ref = jnp.dot(x.astype(bf16), w1.astype(bf16),
                    preferred_element_type=jnp.float32) + b1
    h_ref = jnp.maximum(h_ref, 0.0)
    ref = jnp.dot(h_ref.astype(bf16), w2.astype(bf16),
                  preferred_element_type=jnp.float32) + b2

    # Also sanity-check against full-f32 math (looser tol: bf16 matmul inputs).
    ref_f32 = jnp.maximum(x @ w1 + b1, 0.0) @ w2 + b2

    assert jnp.allclose(out, ref, atol=1e-2, rtol=1e-2)
    assert jnp.allclose(out, ref_f32, atol=5e-2, rtol=5e-2)

    print("KERNEL_OK")
</pallas_src>

<mosaic_0001>
module attributes {stable_mosaic.version = 11 : i64} {
  func.func @mlp_kernel(%arg0: i32, %arg1: memref<16x8xf32, #tpu.memory_space<vmem>>, %arg2: memref<8x32xbf16, #tpu.memory_space<vmem>>, %arg3: memref<1x32xf32, #tpu.memory_space<vmem>>, %arg4: memref<32x4xbf16, #tpu.memory_space<vmem>>, %arg5: memref<1x4xf32, #tpu.memory_space<vmem>>, %arg6: memref<16x4xf32, #tpu.memory_space<vmem>>) attributes {dimension_semantics = [#tpu.dimension_semantics<parallel>], iteration_bounds = array<i64: 1>, scalar_prefetch = 0 : i64, scratch_operands = 0 : i64, tpu.core_type = #tpu.core_type<tc>, window_params = [{transform_indices = @transform_0, window_bounds = array<i64: 16, 8>}, {pipeline_mode = #tpu.pipeline_mode<synchronous>, transform_indices = @transform_1, window_bounds = array<i64: 8, 32>}, {pipeline_mode = #tpu.pipeline_mode<synchronous>, transform_indices = @transform_2, window_bounds = array<i64: 1, 32>}, {pipeline_mode = #tpu.pipeline_mode<synchronous>, transform_indices = @transform_3, window_bounds = array<i64: 32, 4>}, {pipeline_mode = #tpu.pipeline_mode<synchronous>, transform_indices = @transform_4, window_bounds = array<i64: 1, 4>}, {transform_indices = @transform_5, window_bounds = array<i64: 16, 4>}]} {
    %c0 = arith.constant 0 : index
    %c0_0 = arith.constant 0 : index
    %0 = vector.load %arg1[%c0, %c0_0] : memref<16x8xf32, #tpu.memory_space<vmem>>, vector<16x8xf32>
    %1 = arith.truncf %0 : vector<16x8xf32> to vector<16x8xbf16>
    %c0_1 = arith.constant 0 : index
    %c0_2 = arith.constant 0 : index
    %2 = vector.load %arg2[%c0_1, %c0_2] : memref<8x32xbf16, #tpu.memory_space<vmem>>, vector<8x32xbf16>
    %cst = arith.constant dense<0.000000e+00> : vector<16x32xf32>
    %3 = tpu.matmul %1, %2, %cst {dimension_numbers = #tpu.dot_dimension_numbers<[1], [0], [0], [1], [0, 0, 1, 1], [], []>} : vector<16x8xbf16>, vector<8x32xbf16>, vector<16x32xf32> -> vector<16x32xf32>
    %c0_3 = arith.constant 0 : index
    %c0_4 = arith.constant 0 : index
    %4 = vector.load %arg3[%c0_3, %c0_4] : memref<1x32xf32, #tpu.memory_space<vmem>>, vector<1x32xf32>
    %5 = vector.broadcast %4 : vector<1x32xf32> to vector<16x32xf32>
    %6 = arith.addf %3, %5 : vector<16x32xf32>
    %cst_5 = arith.constant 0.000000e+00 : f32
    %7 = vector.broadcast %cst_5 : f32 to vector<16x32xf32>
    %8 = arith.maximumf %6, %7 : vector<16x32xf32>
    %9 = arith.truncf %8 : vector<16x32xf32> to vector<16x32xbf16>
    %c0_6 = arith.constant 0 : index
    %c0_7 = arith.constant 0 : index
    %10 = vector.load %arg4[%c0_6, %c0_7] : memref<32x4xbf16, #tpu.memory_space<vmem>>, vector<32x4xbf16>
    %cst_8 = arith.constant dense<0.000000e+00> : vector<16x4xf32>
    %11 = tpu.matmul %9, %10, %cst_8 {dimension_numbers = #tpu.dot_dimension_numbers<[1], [0], [0], [1], [0, 0, 1, 1], [], []>} : vector<16x32xbf16>, vector<32x4xbf16>, vector<16x4xf32> -> vector<16x4xf32>
    %c0_9 = arith.constant 0 : index
    %c0_10 = arith.constant 0 : index
    %12 = vector.load %arg5[%c0_9, %c0_10] : memref<1x4xf32, #tpu.memory_space<vmem>>, vector<1x4xf32>
    %13 = vector.broadcast %12 : vector<1x4xf32> to vector<16x4xf32>
    %14 = arith.addf %11, %13 : vector<16x4xf32>
    %c0_11 = arith.constant 0 : index
    %c0_12 = arith.constant 0 : index
    %15 = vector.load %arg6[%c0_11, %c0_12] : memref<16x4xf32, #tpu.memory_space<vmem>>, vector<16x4xf32>
    tpu.vector_store %arg6[%c0_11, %c0_12], %14 {strides = array<i32>} : memref<16x4xf32, #tpu.memory_space<vmem>>, vector<16x4xf32>,
    return
  }
  func.func @transform_0(%arg0: i32) -> (i32, i32) {
    %c0_i32 = arith.constant 0 : i32
    %c0_i32_0 = arith.constant 0 : i32
    return %arg0, %c0_i32 : i32, i32
  }
  func.func @transform_1(%arg0: i32) -> (i32, i32) {
    %c0_i32 = arith.constant 0 : i32
    %c0_i32_0 = arith.constant 0 : i32
    %c0_i32_1 = arith.constant 0 : i32
    return %c0_i32, %c0_i32_0 : i32, i32
  }
  func.func @transform_2(%arg0: i32) -> (i32, i32) {
    %c0_i32 = arith.constant 0 : i32
    %c0_i32_0 = arith.constant 0 : i32
    %c0_i32_1 = arith.constant 0 : i32
    return %c0_i32, %c0_i32_0 : i32, i32
  }
  func.func @transform_3(%arg0: i32) -> (i32, i32) {
    %c0_i32 = arith.constant 0 : i32
    %c0_i32_0 = arith.constant 0 : i32
    %c0_i32_1 = arith.constant 0 : i32
    return %c0_i32, %c0_i32_0 : i32, i32
  }
  func.func @transform_4(%arg0: i32) -> (i32, i32) {
    %c0_i32 = arith.constant 0 : i32
    %c0_i32_0 = arith.constant 0 : i32
    %c0_i32_1 = arith.constant 0 : i32
    return %c0_i32, %c0_i32_0 : i32, i32
  }
  func.func @transform_5(%arg0: i32) -> (i32, i32) {
    %c0_i32 = arith.constant 0 : i32
    %c0_i32_0 = arith.constant 0 : i32
    return %arg0, %c0_i32 : i32, i32
  }
}

</mosaic_0001>

<llo_original>
// kernel: net_forward.1
$region0: #{net_forward.1}
  #allocation0 [shape = 'u32[]', space=smem, size = 0x4, offset = 0x4, fixed_abs, tag = 'smem constant byte address 0x4 - core index']
  #allocation1 [shape = 'u32[144,128]{1,0:T(1,128)}', space=vmem, size = 0x12000, scoped, tag = 'internal scratch']
  %s0 = inlined_call_operand.vmem [shape: f32[16,8], index: 0, kind: input, shape index: {}]
  %s1 = inlined_call_operand.vmem [shape: bf16[8,32], index: 1, kind: input, shape index: {}]
  %s2 = inlined_call_operand.vmem [shape: f32[1,32], index: 2, kind: input, shape index: {}]
  %s3 = inlined_call_operand.vmem [shape: bf16[32,4], index: 3, kind: input, shape index: {}]
  %s4 = inlined_call_operand.vmem [shape: f32[1,4], index: 4, kind: input, shape index: {}]
  %s5 = inlined_call_operand.vmem [shape: f32[16,4], index: 5, kind: output, shape index: {}]
  %s6 = sld [smem:[#allocation0]]
  $region30: #{net_forward.1} parent=0
    _
  %s8 = ssub.s32 1, %s6
  %s9 = scalar_select 0, %s8, %s6
  // Predicated region
  $region2: #{net_forward.1} parent=0 // pred_check
    _
  $region3: #{net_forward.1} parent=0 // pred_check_branch
    %11 = sbr.rel (0) target = $region5
  $region4: #{net_forward.1} parent=0 // pred_region
    _
  $region5: #{net_forward.1} parent=0 // pred_fallthru
    _
  // Predicated region
  $region6: #{net_forward.1} parent=0 // pred_check
    _
  $region7: #{net_forward.1} parent=0 // pred_check_branch
    %13 = sbr.rel (0) target = $region9
  $region8: #{net_forward.1} parent=0 // pred_region
    _
  $region9: #{net_forward.1} parent=0 // pred_fallthru
    _
  // Predicated region
  $region10: #{net_forward.1} parent=0 // pred_check
    _
  $region11: #{net_forward.1} parent=0 // pred_check_branch
    %15 = sbr.rel (0) target = $region13
  $region12: #{net_forward.1} parent=0 // pred_region
    _
  $region13: #{net_forward.1} parent=0 // pred_fallthru
    _
  // Predicated region
  $region14: #{net_forward.1} parent=0 // pred_check
    _
  $region15: #{net_forward.1} parent=0 // pred_check_branch
    %17 = sbr.rel (0) target = $region17
  $region16: #{net_forward.1} parent=0 // pred_region
    _
  $region17: #{net_forward.1} parent=0 // pred_fallthru
    _
  // Predicated region
  $region18: #{net_forward.1} parent=0 // pred_check
    _
  $region19: #{net_forward.1} parent=0 // pred_check_branch
    %19 = sbr.rel (0) target = $region21
  $region20: #{net_forward.1} parent=0 // pred_region
    _
  $region21: #{net_forward.1} parent=0 // pred_fallthru
    _
  %v21 = vld [vmem:[%s0] sm:$0xff]
  %v22 = vld [vmem:[%s0 + $0x8] sm:$0xff]
  %v23 = vpack.c.bf16 %v22, %v21
  %v24 = vld [vmem:[%s1] sm:$0xf]
  %v25 = vld [vmem:[%s2] sm:$0x1]
  %v27 = vlaneseq
  %v28 = vshrl.u32 %v27, 7
  %v29 = vsub.s32 0, %v28
  %v30 = vrot.slane %v25, %v29
  %vm32 = vcmask 64512
  %v34 = vsel %vm32, %v23, 0
  %vm36 = vcmask 1043456
  %v38 = vsel %vm36, %v24, 0
  %40 = vmatprep.subr.bf16.mxu0 0
  %41 = vmatpush1.bf16.msra.mxu0 %v38
  %42 = vmatprep.subr.bf16.mxu0 0
  %43 = vmatpush1.bf16.msra.mxu0 0
  %44 = vmatprep.subr.bf16.mxu0 0
  %45 = vmatpush1.bf16.msra.mxu0 0
  %46 = vmatprep.subr.bf16.mxu0 0
  %47 = vmatpush1.bf16.msra.mxu0 0
  %48 = vmatprep.subr.bf16.mxu0 0
  %49 = vmatpush1.bf16.msra.mxu0 0
  %50 = vmatprep.subr.bf16.mxu0 0
  %51 = vmatpush1.bf16.msra.mxu0 0
  %52 = vmatprep.subr.bf16.mxu0 0
  %53 = vmatpush1.bf16.msra.mxu0 0
  %54 = vmatprep.subr.bf16.mxu0 0
  %55 = vmatpush1.bf16.msra.mxu0 0
  %56 = vmatprep.subr.bf16.mxu0 0
  %57 = vmatpush1.bf16.msra.mxu0 0
  %58 = vmatprep.subr.bf16.mxu0 0
  %59 = vmatpush1.bf16.msra.mxu0 0
  %60 = vmatprep.subr.bf16.mxu0 0
  %61 = vmatpush1.bf16.msra.mxu0 0
  %62 = vmatprep.subr.bf16.mxu0 0
  %63 = vmatpush1.bf16.msra.mxu0 0
  %64 = vmatprep.subr.bf16.mxu0 0
  %65 = vmatpush1.bf16.msra.mxu0 0
  %66 = vmatprep.subr.bf16.mxu0 0
  %67 = vmatpush1.bf16.msra.mxu0 0
  %68 = vmatprep.subr.bf16.mxu0 0
  %69 = vmatpush1.bf16.msra.mxu0 0
  %70 = vmatprep.subr.bf16.mxu0 0
  %71 = vmatpush1.bf16.msra.mxu0 0
  %72 = vmatprep.mubr.bf16.mxu0 0
  %73 = vmatmul.mubr.bf16.gmra.mrb[0].mxu0 %v34
  %v74 = vpop.f32.mrb[0].mxu0
  %v75 = vadd.f32 %v30, %v74
  %v76 = vpop.f32.mrb[0].mxu0
  %v77 = vpop.f32.mrb[0].mxu0
  %v78 = vadd.f32 %v30, %v77
  %v79 = vpop.f32.mrb[0].mxu0
  %80 = vdwg.mxu0
  %v81 = vmax.f32 %v75, 0.0
  %v82 = vmax.f32 %v78, 0.0
  %v83 = vpack.c.bf16 %v82, %v81
  %v84 = vld [vmem:[%s3] sm:$0xf]
  %v85 = vld [vmem:[%s3 + $0x4] sm:$0xf]
  %v86 = vld [vmem:[%s3 + $0x8] sm:$0xf]
  %v87 = vld [vmem:[%s3 + $0xc] sm:$0xf]
  %v88 = vld [vmem:[%s4] sm:$0x1]
  %v90 = vlaneseq
  %v91 = vshrl.u32 %v90, 7
  %v92 = vsub.s32 0, %v91
  %v93 = vrot.slane %v88, %v92
  %v99 = vunpack.c.l.b16 %v84
  %v100 = vunpack.c.l.b16 %v85
  %v101 = vunpack.c.l.b16 %v86
  %v102 = vunpack.c.l.b16 %v87
  %v103 = vpack.c.b16 %v100, %v99
  %v104 = vpack.c.b16 %v102, %v101
  %vm107 = vcmask 261120
  %v109 = vsel %vm107, %v83, 0
  %111 = vmatprep.subr.bf16.mxu0 0
  %112 = vmatpush1.bf16.msra.mxu0 %v103
  %113 = vmatprep.subr.bf16.mxu0 0
  %114 = vmatpush1.bf16.msra.mxu0 %v104
  %115 = vmatprep.subr.bf16.mxu0 0
  %116 = vmatpush1.bf16.msra.mxu0 0
  %117 = vmatprep.subr.bf16.mxu0 0
  %118 = vmatpush1.bf16.msra.mxu0 0
  %119 = vmatprep.subr.bf16.mxu0 0
  %120 = vmatpush1.bf16.msra.mxu0 0
  %121 = vmatprep.subr.bf16.mxu0 0
  %122 = vmatpush1.bf16.msra.mxu0 0
  %123 = vmatprep.subr.bf16.mxu0 0
  %124 = vmatpush1.bf16.msra.mxu0 0
  %125 = vmatprep.subr.bf16.mxu0 0
  %126 = vmatpush1.bf16.msra.mxu0 0
  %127 = vmatprep.subr.bf16.mxu0 0
  %128 = vmatpush1.bf16.msra.mxu0 0
  %129 = vmatprep.subr.bf16.mxu0 0
  %130 = vmatpush1.bf16.msra.mxu0 0
  %131 = vmatprep.subr.bf16.mxu0 0
  %132 = vmatpush1.bf16.msra.mxu0 0
  %133 = vmatprep.subr.bf16.mxu0 0
  %134 = vmatpush1.bf16.msra.mxu0 0
  %135 = vmatprep.subr.bf16.mxu0 0
  %136 = vmatpush1.bf16.msra.mxu0 0
  %137 = vmatprep.subr.bf16.mxu0 0
  %138 = vmatpush1.bf16.msra.mxu0 0
  %139 = vmatprep.subr.bf16.mxu0 0
  %140 = vmatpush1.bf16.msra.mxu0 0
  %141 = vmatprep.subr.bf16.mxu0 0
  %142 = vmatpush1.bf16.msra.mxu0 0
  %143 = vmatprep.mubr.bf16.mxu0 0
  %144 = vmatmul.mubr.bf16.gmra.mrb[0].mxu0 %v109
  %v145 = vpop.f32.mrb[0].mxu0
  %v146 = vadd.f32 %v93, %v145
  %v147 = vpop.f32.mrb[0].mxu0
  %v148 = vpop.f32.mrb[0].mxu0
  %v149 = vadd.f32 %v93, %v148
  %v150 = vpop.f32.mrb[0].mxu0
  %151 = vdwg.mxu0
  %vm152 = vcmask 31744
  %153 = vst.msk [vmem:[%s5] sm:$0xff] %vm152, %v146
  %154 = vst.msk [vmem:[%s5 + $0x8] sm:$0xff] %vm152, %v149
  // Predicated region
  $region22: #{net_forward.1} parent=0 // pred_check
    _
  $region23: #{net_forward.1} parent=0 // pred_check_branch
    %156 = sbr.rel (0) target = $region25
  $region24: #{net_forward.1} parent=0 // pred_region
    _
  $region25: #{net_forward.1} parent=0 // pred_fallthru
    _
  // Predicated region
  $region26: #{net_forward.1} parent=0 // pred_check
    _
  $region27: #{net_forward.1} parent=0 // pred_check_branch
    %158 = sbr.rel (0) target = $region29
  $region28: #{net_forward.1} parent=0 // pred_region
    _
  $region29: #{net_forward.1} parent=0 // pred_fallthru
    _

</llo_original>
